<compile_context>
chip_gen: v6e
topology: v6e:2x2x1
jax: 0.10.0
libtpu: 0.0.40
codegen_flags: <defaults>
</compile_context>

<pallas_src>
import functools

import jax
import jax.numpy as jnp
from jax import lax
from jax.experimental import pallas as pl
from jax.experimental.pallas import tpu as pltpu


def _round_up(n, m):
    return ((n + m - 1) // m) * m


def _ffn_kernel(x_ref, gamma_ref, beta_ref, w1_ref, b1_ref, w2_ref, b2_ref,
                o_ref, xn_ref, acc_ref, *, eps: float, approximate_gelu: bool):
    k = pl.program_id(1)

    @pl.when(k == 0)
    def _():
        # --- LayerNorm over the last dim (f32), computed once per row tile ---
        x = x_ref[...].astype(jnp.float32)
        mean = jnp.mean(x, axis=-1, keepdims=True)
        xc = x - mean
        var = jnp.mean(xc * xc, axis=-1, keepdims=True)
        xn = xc * lax.rsqrt(var + eps)
        xn = (xn * gamma_ref[...].astype(jnp.float32)
              + beta_ref[...].astype(jnp.float32))
        xn_ref[...] = xn.astype(xn_ref.dtype)          # cache as bf16 operand
        acc_ref[...] = jnp.zeros_like(acc_ref)

    # --- Linear(dim -> th slab of hidden), bf16 operands, f32 accumulate ---
    h = jnp.dot(xn_ref[...], w1_ref[...], preferred_element_type=jnp.float32)
    h = h + b1_ref[...].astype(jnp.float32)

    # --- GELU ---
    if approximate_gelu:
        c = jnp.float32(0.7978845608028654)  # sqrt(2/pi)
        h = 0.5 * h * (1.0 + jnp.tanh(c * (h + jnp.float32(0.044715) * h * h * h)))
    else:
        # exact erf form, matching torch.nn.GELU() default
        h = 0.5 * h * (1.0 + lax.erf(h * jnp.float32(0.7071067811865476)))

    # --- Linear(th slab of hidden -> dim), accumulated in f32 scratch ---
    acc_ref[...] += jnp.dot(h.astype(w2_ref.dtype), w2_ref[...],
                            preferred_element_type=jnp.float32)

    @pl.when(k == pl.num_programs(1) - 1)
    def _():
        y = acc_ref[...] + b2_ref[...].astype(jnp.float32)
        o_ref[...] = y.astype(o_ref.dtype)


def _build_call(*, M_pad, D, H_pad, tm, th, out_dtype, compute_dtype, eps,
                approximate_gelu, vmem_limit_bytes, single_buffer_invariants):
    inv_kw = ({"pipeline_mode": pl.Buffered(1)}
              if single_buffer_invariants else {})

    n_row_tiles = M_pad // tm
    w_itemsize = jnp.dtype(compute_dtype).itemsize
    weight_bytes = 2 * D * H_pad * w_itemsize
    cost = pl.CostEstimate(
        flops=int(4 * M_pad * D * H_pad),                    # two matmuls
        transcendentals=int(M_pad * H_pad),                  # one erf/tanh per h
        bytes_accessed=int(2 * M_pad * D * 4 + weight_bytes * n_row_tiles),
    )

    grid_spec = pltpu.PrefetchScalarGridSpec(
        num_scalar_prefetch=0,
        grid=(n_row_tiles, H_pad // th),
        in_specs=[
            pl.BlockSpec((tm, D), lambda i, k: (i, 0)),             # x rows
            pl.BlockSpec((1, D), lambda i, k: (0, 0), **inv_kw),    # LN gamma
            pl.BlockSpec((1, D), lambda i, k: (0, 0), **inv_kw),    # LN beta
            pl.BlockSpec((D, th), lambda i, k: (0, k)),             # W1 slab
            pl.BlockSpec((1, th), lambda i, k: (0, k)),             # b1 slab
            pl.BlockSpec((th, D), lambda i, k: (k, 0)),             # W2 slab
            pl.BlockSpec((1, D), lambda i, k: (0, 0), **inv_kw),    # b2
        ],
        out_specs=pl.BlockSpec((tm, D), lambda i, k: (i, 0)),
        scratch_shapes=[
            pltpu.VMEM((tm, D), compute_dtype),   # cached normalized x
            pltpu.VMEM((tm, D), jnp.float32),     # output accumulator
        ],
    )

    return pl.pallas_call(
        functools.partial(_ffn_kernel, eps=eps,
                          approximate_gelu=approximate_gelu),
        out_shape=jax.ShapeDtypeStruct((M_pad, D), out_dtype),
        grid_spec=grid_spec,
        compiler_params=pltpu.CompilerParams(
            dimension_semantics=("parallel", "arbitrary"),
            vmem_limit_bytes=vmem_limit_bytes),
        cost_estimate=cost,
    )


def feed_forward(x, params, *, tm: int = 256, th: int = 512, eps: float = 1e-5,
                 compute_dtype=jnp.bfloat16, approximate_gelu: bool = False,
                 vmem_limit_bytes: int = 48 * 1024 * 1024):
    """x: (batch, seq, dim) -> (batch, seq, dim)."""
    gamma, beta, w1, b1, w2, b2 = params
    B, S, D = x.shape
    H = w1.shape[1]
    M = B * S

    # Row tiling: clamp tm for tiny inputs, pad M so the grid divides evenly.
    tm = min(tm, _round_up(M, 8))
    M_pad = _round_up(M, tm)

    # Hidden tiling: stream W1/W2 in th-wide slabs; pad H if needed. Zero-padded
    # hidden columns give gelu(0) == 0, contributing nothing to the output.
    if H <= th:
        th = H
        H_pad = H
    else:
        H_pad = _round_up(H, th)

    x2d = x.reshape(M, D)
    if M_pad != M:
        x2d = jnp.pad(x2d, ((0, M_pad - M), (0, 0)))

    w1c, b1c, w2c = w1, b1, w2
    if H_pad != H:
        w1c = jnp.pad(w1c, ((0, 0), (0, H_pad - H)))
        b1c = jnp.pad(b1c, ((0, H_pad - H),))
        w2c = jnp.pad(w2c, ((0, H_pad - H), (0, 0)))

    # bf16 MXU operands (f32 accumulation); LN params and biases stay f32.
    w1c = w1c.astype(compute_dtype)
    w2c = w2c.astype(compute_dtype)

    args = (x2d, gamma.reshape(1, D), beta.reshape(1, D),
            w1c, b1c.reshape(1, H_pad), w2c, b2.reshape(1, D))

    common = dict(M_pad=M_pad, D=D, H_pad=H_pad, tm=tm, th=th,
                  out_dtype=x.dtype, compute_dtype=compute_dtype, eps=eps,
                  approximate_gelu=approximate_gelu,
                  vmem_limit_bytes=vmem_limit_bytes)
    try:
        out2d = _build_call(single_buffer_invariants=True, **common)(*args)
        out2d = jax.block_until_ready(out2d)
    except Exception:
        # Fallback if this Pallas build rejects pl.Buffered(1) on invariants.
        out2d = _build_call(single_buffer_invariants=False, **common)(*args)

    return out2d[:M].reshape(B, S, D)


def _reference(x, params, eps=1e-5):
    gamma, beta, w1, b1, w2, b2 = params
    xf = x.astype(jnp.float32)
    mean = jnp.mean(xf, axis=-1, keepdims=True)
    var = jnp.mean((xf - mean) ** 2, axis=-1, keepdims=True)
    xn = (xf - mean) / jnp.sqrt(var + eps) * gamma + beta
    h = xn @ w1 + b1
    h = 0.5 * h * (1.0 + lax.erf(h / jnp.sqrt(2.0)))
    y = h @ w2 + b2
    return y.astype(x.dtype)


if __name__ == "__main__":
    key = jax.random.PRNGKey(0)
    B, S, D, H = 2, 8, 32, 64   # batch, seq, dim, hidden_dim

    k = jax.random.split(key, 7)
    x = jax.random.normal(k[0], (B, S, D), dtype=jnp.float32)

    # Deterministic parameter init (shapes per the PyTorch module __init__).
    gamma = 1.0 + 0.1 * jax.random.normal(k[5], (D,), jnp.float32)
    beta = 0.1 * jax.random.normal(k[6], (D,), jnp.float32)
    w1 = jax.random.normal(k[1], (D, H), jnp.float32) * (1.0 / jnp.sqrt(D))
    b1 = jax.random.normal(k[2], (H,), jnp.float32) * 0.01
    w2 = jax.random.normal(k[3], (H, D), jnp.float32) * (1.0 / jnp.sqrt(H))
    b2 = jax.random.normal(k[4], (D,), jnp.float32) * 0.01
    params = (gamma, beta, w1, b1, w2, b2)

    out = feed_forward(x, params)
    out = jax.block_until_ready(out)

    ref = _reference(x, params)
    assert out.shape == (B, S, D)
    # bf16 MXU operands (f32 accumulate) vs f32 reference: loosened tolerance.
    assert jnp.allclose(out, ref, atol=2e-2, rtol=2e-2), "mismatch vs reference"

    print("KERNEL_OK")
</pallas_src>

<mosaic_0001>
module attributes {stable_mosaic.version = 11 : i64} {
  func.func @_ffn_kernel(%arg0: i32, %arg1: i32, %arg2: memref<16x32xf32, #tpu.memory_space<vmem>>, %arg3: memref<1x32xf32, #tpu.memory_space<vmem>>, %arg4: memref<1x32xf32, #tpu.memory_space<vmem>>, %arg5: memref<32x64xbf16, #tpu.memory_space<vmem>>, %arg6: memref<1x64xf32, #tpu.memory_space<vmem>>, %arg7: memref<64x32xbf16, #tpu.memory_space<vmem>>, %arg8: memref<1x32xf32, #tpu.memory_space<vmem>>, %arg9: memref<16x32xf32, #tpu.memory_space<vmem>>, %arg10: memref<16x32xbf16, #tpu.memory_space<vmem>>, %arg11: memref<16x32xf32, #tpu.memory_space<vmem>>) attributes {dimension_semantics = [#tpu.dimension_semantics<parallel>, #tpu.dimension_semantics<arbitrary>], iteration_bounds = array<i64: 1, 1>, scalar_prefetch = 0 : i64, scratch_operands = 2 : i64, tpu.core_type = #tpu.core_type<tc>, window_params = [{transform_indices = @transform_0, window_bounds = array<i64: 16, 32>}, {pipeline_mode = #tpu.pipeline_mode<synchronous>, transform_indices = @transform_1, window_bounds = array<i64: 1, 32>}, {pipeline_mode = #tpu.pipeline_mode<synchronous>, transform_indices = @transform_2, window_bounds = array<i64: 1, 32>}, {transform_indices = @transform_3, window_bounds = array<i64: 32, 64>}, {transform_indices = @transform_4, window_bounds = array<i64: 1, 64>}, {transform_indices = @transform_5, window_bounds = array<i64: 64, 32>}, {pipeline_mode = #tpu.pipeline_mode<synchronous>, transform_indices = @transform_6, window_bounds = array<i64: 1, 32>}, {transform_indices = @transform_7, window_bounds = array<i64: 16, 32>}]} {
    %c0_i32 = arith.constant 0 : i32
    %0 = arith.cmpi eq, %arg1, %c0_i32 : i32
    %1 = arith.extui %0 : i1 to i32
    %c0_i32_0 = arith.constant 0 : i32
    %2 = arith.cmpi ne, %1, %c0_i32_0 : i32
    scf.if %2 {
      %c0_18 = arith.constant 0 : index
      %c0_19 = arith.constant 0 : index
      %26 = vector.load %arg2[%c0_18, %c0_19] : memref<16x32xf32, #tpu.memory_space<vmem>>, vector<16x32xf32>
      %cst_20 = arith.constant dense<0.000000e+00> : vector<16xf32>
      %27 = vector.multi_reduction <add>, %26, %cst_20 [1] : vector<16x32xf32> to vector<16xf32>
      %28 = vector.shape_cast %27 : vector<16xf32> to vector<16x1xf32>
      %cst_21 = arith.constant 3.200000e+01 : f32
      %29 = vector.broadcast %cst_21 : f32 to vector<16x1xf32>
      %30 = arith.divf %28, %29 : vector<16x1xf32>
      %31 = vector.broadcast %30 : vector<16x1xf32> to vector<16x32xf32>
      %32 = arith.subf %26, %31 : vector<16x32xf32>
      %33 = arith.mulf %32, %32 : vector<16x32xf32>
      %cst_22 = arith.constant dense<0.000000e+00> : vector<16xf32>
      %34 = vector.multi_reduction <add>, %33, %cst_22 [1] : vector<16x32xf32> to vector<16xf32>
      %35 = vector.shape_cast %34 : vector<16xf32> to vector<16x1xf32>
      %cst_23 = arith.constant 3.200000e+01 : f32
      %36 = vector.broadcast %cst_23 : f32 to vector<16x1xf32>
      %37 = arith.divf %35, %36 : vector<16x1xf32>
      %cst_24 = arith.constant 9.99999974E-6 : f32
      %38 = vector.broadcast %cst_24 : f32 to vector<16x1xf32>
      %39 = arith.addf %37, %38 : vector<16x1xf32>
      %40 = math.rsqrt %39 : vector<16x1xf32>
      %41 = vector.broadcast %40 : vector<16x1xf32> to vector<16x32xf32>
      %42 = arith.mulf %32, %41 : vector<16x32xf32>
      %c0_25 = arith.constant 0 : index
      %c0_26 = arith.constant 0 : index
      %43 = vector.load %arg3[%c0_25, %c0_26] : memref<1x32xf32, #tpu.memory_space<vmem>>, vector<1x32xf32>
      %44 = vector.broadcast %43 : vector<1x32xf32> to vector<16x32xf32>
      %45 = arith.mulf %42, %44 : vector<16x32xf32>
      %c0_27 = arith.constant 0 : index
      %c0_28 = arith.constant 0 : index
      %46 = vector.load %arg4[%c0_27, %c0_28] : memref<1x32xf32, #tpu.memory_space<vmem>>, vector<1x32xf32>
      %47 = vector.broadcast %46 : vector<1x32xf32> to vector<16x32xf32>
      %48 = arith.addf %45, %47 : vector<16x32xf32>
      %49 = arith.truncf %48 : vector<16x32xf32> to vector<16x32xbf16>
      %c0_29 = arith.constant 0 : index
      %c0_30 = arith.constant 0 : index
      %50 = vector.load %arg10[%c0_29, %c0_30] : memref<16x32xbf16, #tpu.memory_space<vmem>>, vector<16x32xbf16>
      tpu.vector_store %arg10[%c0_29, %c0_30], %49 {strides = array<i32>} : memref<16x32xbf16, #tpu.memory_space<vmem>>, vector<16x32xbf16>,
      %cst_31 = arith.constant 0.000000e+00 : f32
      %51 = vector.broadcast %cst_31 : f32 to vector<16x32xf32>
      %c0_32 = arith.constant 0 : index
      %c0_33 = arith.constant 0 : index
      %52 = vector.load %arg11[%c0_32, %c0_33] : memref<16x32xf32, #tpu.memory_space<vmem>>, vector<16x32xf32>
      tpu.vector_store %arg11[%c0_32, %c0_33], %51 {strides = array<i32>} : memref<16x32xf32, #tpu.memory_space<vmem>>, vector<16x32xf32>,
    } else {
    }
    %c0 = arith.constant 0 : index
    %c0_1 = arith.constant 0 : index
    %3 = vector.load %arg10[%c0, %c0_1] : memref<16x32xbf16, #tpu.memory_space<vmem>>, vector<16x32xbf16>
    %c0_2 = arith.constant 0 : index
    %c0_3 = arith.constant 0 : index
    %4 = vector.load %arg5[%c0_2, %c0_3] : memref<32x64xbf16, #tpu.memory_space<vmem>>, vector<32x64xbf16>
    %cst = arith.constant dense<0.000000e+00> : vector<16x64xf32>
    %5 = tpu.matmul %3, %4, %cst {dimension_numbers = #tpu.dot_dimension_numbers<[1], [0], [0], [1], [0, 0, 1, 1], [], []>} : vector<16x32xbf16>, vector<32x64xbf16>, vector<16x64xf32> -> vector<16x64xf32>
    %c0_4 = arith.constant 0 : index
    %c0_5 = arith.constant 0 : index
    %6 = vector.load %arg6[%c0_4, %c0_5] : memref<1x64xf32, #tpu.memory_space<vmem>>, vector<1x64xf32>
    %7 = vector.broadcast %6 : vector<1x64xf32> to vector<16x64xf32>
    %8 = arith.addf %5, %7 : vector<16x64xf32>
    %cst_6 = arith.constant 5.000000e-01 : f32
    %9 = vector.broadcast %cst_6 : f32 to vector<16x64xf32>
    %10 = arith.mulf %9, %8 : vector<16x64xf32>
    %cst_7 = arith.constant 0.707106769 : f32
    %11 = vector.broadcast %cst_7 : f32 to vector<16x64xf32>
    %12 = arith.mulf %8, %11 : vector<16x64xf32>
    %13 = math.erf %12 : vector<16x64xf32>
    %cst_8 = arith.constant 1.000000e+00 : f32
    %14 = vector.broadcast %cst_8 : f32 to vector<16x64xf32>
    %15 = arith.addf %14, %13 : vector<16x64xf32>
    %16 = arith.mulf %10, %15 : vector<16x64xf32>
    %c0_9 = arith.constant 0 : index
    %c0_10 = arith.constant 0 : index
    %17 = vector.load %arg11[%c0_9, %c0_10] : memref<16x32xf32, #tpu.memory_space<vmem>>, vector<16x32xf32>
    %18 = arith.truncf %16 : vector<16x64xf32> to vector<16x64xbf16>
    %c0_11 = arith.constant 0 : index
    %c0_12 = arith.constant 0 : index
    %19 = vector.load %arg7[%c0_11, %c0_12] : memref<64x32xbf16, #tpu.memory_space<vmem>>, vector<64x32xbf16>
    %cst_13 = arith.constant dense<0.000000e+00> : vector<16x32xf32>
    %20 = tpu.matmul %18, %19, %cst_13 {dimension_numbers = #tpu.dot_dimension_numbers<[1], [0], [0], [1], [0, 0, 1, 1], [], []>} : vector<16x64xbf16>, vector<64x32xbf16>, vector<16x32xf32> -> vector<16x32xf32>
    %21 = arith.addf %17, %20 : vector<16x32xf32>
    %c0_14 = arith.constant 0 : index
    %c0_15 = arith.constant 0 : index
    %22 = vector.load %arg11[%c0_14, %c0_15] : memref<16x32xf32, #tpu.memory_space<vmem>>, vector<16x32xf32>
    tpu.vector_store %arg11[%c0_14, %c0_15], %21 {strides = array<i32>} : memref<16x32xf32, #tpu.memory_space<vmem>>, vector<16x32xf32>,
    %c0_i32_16 = arith.constant 0 : i32
    %23 = arith.cmpi eq, %arg1, %c0_i32_16 : i32
    %24 = arith.extui %23 : i1 to i32
    %c0_i32_17 = arith.constant 0 : i32
    %25 = arith.cmpi ne, %24, %c0_i32_17 : i32
    scf.if %25 {
      %c0_18 = arith.constant 0 : index
      %c0_19 = arith.constant 0 : index
      %26 = vector.load %arg11[%c0_18, %c0_19] : memref<16x32xf32, #tpu.memory_space<vmem>>, vector<16x32xf32>
      %c0_20 = arith.constant 0 : index
      %c0_21 = arith.constant 0 : index
      %27 = vector.load %arg8[%c0_20, %c0_21] : memref<1x32xf32, #tpu.memory_space<vmem>>, vector<1x32xf32>
      %28 = vector.broadcast %27 : vector<1x32xf32> to vector<16x32xf32>
      %29 = arith.addf %26, %28 : vector<16x32xf32>
      %c0_22 = arith.constant 0 : index
      %c0_23 = arith.constant 0 : index
      %30 = vector.load %arg9[%c0_22, %c0_23] : memref<16x32xf32, #tpu.memory_space<vmem>>, vector<16x32xf32>
      tpu.vector_store %arg9[%c0_22, %c0_23], %29 {strides = array<i32>} : memref<16x32xf32, #tpu.memory_space<vmem>>, vector<16x32xf32>,
    } else {
    }
    return
  }
  func.func @transform_0(%arg0: i32, %arg1: i32) -> (i32, i32) {
    %c0_i32 = arith.constant 0 : i32
    %c0_i32_0 = arith.constant 0 : i32
    return %arg0, %c0_i32 : i32, i32
  }
  func.func @transform_1(%arg0: i32, %arg1: i32) -> (i32, i32) {
    %c0_i32 = arith.constant 0 : i32
    %c0_i32_0 = arith.constant 0 : i32
    %c0_i32_1 = arith.constant 0 : i32
    return %c0_i32, %c0_i32_0 : i32, i32
  }
  func.func @transform_2(%arg0: i32, %arg1: i32) -> (i32, i32) {
    %c0_i32 = arith.constant 0 : i32
    %c0_i32_0 = arith.constant 0 : i32
    %c0_i32_1 = arith.constant 0 : i32
    return %c0_i32, %c0_i32_0 : i32, i32
  }
  func.func @transform_3(%arg0: i32, %arg1: i32) -> (i32, i32) {
    %c0_i32 = arith.constant 0 : i32
    %c0_i32_0 = arith.constant 0 : i32
    return %c0_i32, %arg1 : i32, i32
  }
  func.func @transform_4(%arg0: i32, %arg1: i32) -> (i32, i32) {
    %c0_i32 = arith.constant 0 : i32
    %c0_i32_0 = arith.constant 0 : i32
    return %c0_i32, %arg1 : i32, i32
  }
  func.func @transform_5(%arg0: i32, %arg1: i32) -> (i32, i32) {
    %c0_i32 = arith.constant 0 : i32
    %c0_i32_0 = arith.constant 0 : i32
    return %arg1, %c0_i32 : i32, i32
  }
  func.func @transform_6(%arg0: i32, %arg1: i32) -> (i32, i32) {
    %c0_i32 = arith.constant 0 : i32
    %c0_i32_0 = arith.constant 0 : i32
    %c0_i32_1 = arith.constant 0 : i32
    return %c0_i32, %c0_i32_0 : i32, i32
  }
  func.func @transform_7(%arg0: i32, %arg1: i32) -> (i32, i32) {
    %c0_i32 = arith.constant 0 : i32
    %c0_i32_0 = arith.constant 0 : i32
    return %arg0, %c0_i32 : i32, i32
  }
}

module attributes {stable_mosaic.version = 11 : i64} {
  func.func @_ffn_kernel(%arg0: i32, %arg1: i32, %arg2: memref<16x32xf32, #tpu.memory_space<vmem>>, %arg3: memref<1x32xf32, #tpu.memory_space<vmem>>, %arg4: memref<1x32xf32, #tpu.memory_space<vmem>>, %arg5: memref<32x64xbf16, #tpu.memory_space<vmem>>, %arg6: memref<1x64xf32, #tpu.memory_space<vmem>>, %arg7: memref<64x32xbf16, #tpu.memory_space<vmem>>, %arg8: memref<1x32xf32, #tpu.memory_space<vmem>>, %arg9: memref<16x32xf32, #tpu.memory_space<vmem>>, %arg10: memref<16x32xbf16, #tpu.memory_space<vmem>>, %arg11: memref<16x32xf32, #tpu.memory_space<vmem>>) attributes {dimension_semantics = [#tpu.dimension_semantics<parallel>, #tpu.dimension_semantics<arbitrary>], iteration_bounds = array<i64: 1, 1>, scalar_prefetch = 0 : i64, scratch_operands = 2 : i64, tpu.core_type = #tpu.core_type<tc>, window_params = [{transform_indices = @transform_0, window_bounds = array<i64: 16, 32>}, {pipeline_mode = #tpu.pipeline_mode<synchronous>, transform_indices = @transform_1, window_bounds = array<i64: 1, 32>}, {pipeline_mode = #tpu.pipeline_mode<synchronous>, transform_indices = @transform_2, window_bounds = array<i64: 1, 32>}, {transform_indices = @transform_3, window_bounds = array<i64: 32, 64>}, {transform_indices = @transform_4, window_bounds = array<i64: 1, 64>}, {transform_indices = @transform_5, window_bounds = array<i64: 64, 32>}, {pipeline_mode = #tpu.pipeline_mode<synchronous>, transform_indices = @transform_6, window_bounds = array<i64: 1, 32>}, {transform_indices = @transform_7, window_bounds = array<i64: 16, 32>}]} {
    %c0_i32 = arith.constant 0 : i32
    %0 = arith.cmpi eq, %arg1, %c0_i32 : i32
    %1 = arith.extui %0 : i1 to i32
    %c0_i32_0 = arith.constant 0 : i32
    %2 = arith.cmpi ne, %1, %c0_i32_0 : i32
    scf.if %2 {
      %c0_18 = arith.constant 0 : index
      %c0_19 = arith.constant 0 : index
      %26 = vector.load %arg2[%c0_18, %c0_19] : memref<16x32xf32, #tpu.memory_space<vmem>>, vector<16x32xf32>
      %cst_20 = arith.constant dense<0.000000e+00> : vector<16xf32>
      %27 = vector.multi_reduction <add>, %26, %cst_20 [1] : vector<16x32xf32> to vector<16xf32>
      %28 = vector.shape_cast %27 : vector<16xf32> to vector<16x1xf32>
      %cst_21 = arith.constant 3.200000e+01 : f32
      %29 = vector.broadcast %cst_21 : f32 to vector<16x1xf32>
      %30 = arith.divf %28, %29 : vector<16x1xf32>
      %31 = vector.broadcast %30 : vector<16x1xf32> to vector<16x32xf32>
      %32 = arith.subf %26, %31 : vector<16x32xf32>
      %33 = arith.mulf %32, %32 : vector<16x32xf32>
      %cst_22 = arith.constant dense<0.000000e+00> : vector<16xf32>
      %34 = vector.multi_reduction <add>, %33, %cst_22 [1] : vector<16x32xf32> to vector<16xf32>
      %35 = vector.shape_cast %34 : vector<16xf32> to vector<16x1xf32>
      %cst_23 = arith.constant 3.200000e+01 : f32
      %36 = vector.broadcast %cst_23 : f32 to vector<16x1xf32>
      %37 = arith.divf %35, %36 : vector<16x1xf32>
      %cst_24 = arith.constant 9.99999974E-6 : f32
      %38 = vector.broadcast %cst_24 : f32 to vector<16x1xf32>
      %39 = arith.addf %37, %38 : vector<16x1xf32>
      %40 = math.rsqrt %39 : vector<16x1xf32>
      %41 = vector.broadcast %40 : vector<16x1xf32> to vector<16x32xf32>
      %42 = arith.mulf %32, %41 : vector<16x32xf32>
      %c0_25 = arith.constant 0 : index
      %c0_26 = arith.constant 0 : index
      %43 = vector.load %arg3[%c0_25, %c0_26] : memref<1x32xf32, #tpu.memory_space<vmem>>, vector<1x32xf32>
      %44 = vector.broadcast %43 : vector<1x32xf32> to vector<16x32xf32>
      %45 = arith.mulf %42, %44 : vector<16x32xf32>
      %c0_27 = arith.constant 0 : index
      %c0_28 = arith.constant 0 : index
      %46 = vector.load %arg4[%c0_27, %c0_28] : memref<1x32xf32, #tpu.memory_space<vmem>>, vector<1x32xf32>
      %47 = vector.broadcast %46 : vector<1x32xf32> to vector<16x32xf32>
      %48 = arith.addf %45, %47 : vector<16x32xf32>
      %49 = arith.truncf %48 : vector<16x32xf32> to vector<16x32xbf16>
      %c0_29 = arith.constant 0 : index
      %c0_30 = arith.constant 0 : index
      %50 = vector.load %arg10[%c0_29, %c0_30] : memref<16x32xbf16, #tpu.memory_space<vmem>>, vector<16x32xbf16>
      tpu.vector_store %arg10[%c0_29, %c0_30], %49 {strides = array<i32>} : memref<16x32xbf16, #tpu.memory_space<vmem>>, vector<16x32xbf16>,
      %cst_31 = arith.constant 0.000000e+00 : f32
      %51 = vector.broadcast %cst_31 : f32 to vector<16x32xf32>
      %c0_32 = arith.constant 0 : index
      %c0_33 = arith.constant 0 : index
      %52 = vector.load %arg11[%c0_32, %c0_33] : memref<16x32xf32, #tpu.memory_space<vmem>>, vector<16x32xf32>
      tpu.vector_store %arg11[%c0_32, %c0_33], %51 {strides = array<i32>} : memref<16x32xf32, #tpu.memory_space<vmem>>, vector<16x32xf32>,
    } else {
    }
    %c0 = arith.constant 0 : index
    %c0_1 = arith.constant 0 : index
    %3 = vector.load %arg10[%c0, %c0_1] : memref<16x32xbf16, #tpu.memory_space<vmem>>, vector<16x32xbf16>
    %c0_2 = arith.constant 0 : index
    %c0_3 = arith.constant 0 : index
    %4 = vector.load %arg5[%c0_2, %c0_3] : memref<32x64xbf16, #tpu.memory_space<vmem>>, vector<32x64xbf16>
    %cst = arith.constant dense<0.000000e+00> : vector<16x64xf32>
    %5 = tpu.matmul %3, %4, %cst {dimension_numbers = #tpu.dot_dimension_numbers<[1], [0], [0], [1], [0, 0, 1, 1], [], []>} : vector<16x32xbf16>, vector<32x64xbf16>, vector<16x64xf32> -> vector<16x64xf32>
    %c0_4 = arith.constant 0 : index
    %c0_5 = arith.constant 0 : index
    %6 = vector.load %arg6[%c0_4, %c0_5] : memref<1x64xf32, #tpu.memory_space<vmem>>, vector<1x64xf32>
    %7 = vector.broadcast %6 : vector<1x64xf32> to vector<16x64xf32>
    %8 = arith.addf %5, %7 : vector<16x64xf32>
    %cst_6 = arith.constant 5.000000e-01 : f32
    %9 = vector.broadcast %cst_6 : f32 to vector<16x64xf32>
    %10 = arith.mulf %9, %8 : vector<16x64xf32>
    %cst_7 = arith.constant 0.707106769 : f32
    %11 = vector.broadcast %cst_7 : f32 to vector<16x64xf32>
    %12 = arith.mulf %8, %11 : vector<16x64xf32>
    %13 = math.erf %12 : vector<16x64xf32>
    %cst_8 = arith.constant 1.000000e+00 : f32
    %14 = vector.broadcast %cst_8 : f32 to vector<16x64xf32>
    %15 = arith.addf %14, %13 : vector<16x64xf32>
    %16 = arith.mulf %10, %15 : vector<16x64xf32>
    %c0_9 = arith.constant 0 : index
    %c0_10 = arith.constant 0 : index
    %17 = vector.load %arg11[%c0_9, %c0_10] : memref<16x32xf32, #tpu.memory_space<vmem>>, vector<16x32xf32>
    %18 = arith.truncf %16 : vector<16x64xf32> to vector<16x64xbf16>
    %c0_11 = arith.constant 0 : index
    %c0_12 = arith.constant 0 : index
    %19 = vector.load %arg7[%c0_11, %c0_12] : memref<64x32xbf16, #tpu.memory_space<vmem>>, vector<64x32xbf16>
    %cst_13 = arith.constant dense<0.000000e+00> : vector<16x32xf32>
    %20 = tpu.matmul %18, %19, %cst_13 {dimension_numbers = #tpu.dot_dimension_numbers<[1], [0], [0], [1], [0, 0, 1, 1], [], []>} : vector<16x64xbf16>, vector<64x32xbf16>, vector<16x32xf32> -> vector<16x32xf32>
    %21 = arith.addf %17, %20 : vector<16x32xf32>
    %c0_14 = arith.constant 0 : index
    %c0_15 = arith.constant 0 : index
    %22 = vector.load %arg11[%c0_14, %c0_15] : memref<16x32xf32, #tpu.memory_space<vmem>>, vector<16x32xf32>
    tpu.vector_store %arg11[%c0_14, %c0_15], %21 {strides = array<i32>} : memref<16x32xf32, #tpu.memory_space<vmem>>, vector<16x32xf32>,
    %c0_i32_16 = arith.constant 0 : i32
    %23 = arith.cmpi eq, %arg1, %c0_i32_16 : i32
    %24 = arith.extui %23 : i1 to i32
    %c0_i32_17 = arith.constant 0 : i32
    %25 = arith.cmpi ne, %24, %c0_i32_17 : i32
    scf.if %25 {
      %c0_18 = arith.constant 0 : index
      %c0_19 = arith.constant 0 : index
      %26 = vector.load %arg11[%c0_18, %c0_19] : memref<16x32xf32, #tpu.memory_space<vmem>>, vector<16x32xf32>
      %c0_20 = arith.constant 0 : index
      %c0_21 = arith.constant 0 : index
      %27 = vector.load %arg8[%c0_20, %c0_21] : memref<1x32xf32, #tpu.memory_space<vmem>>, vector<1x32xf32>
      %28 = vector.broadcast %27 : vector<1x32xf32> to vector<16x32xf32>
      %29 = arith.addf %26, %28 : vector<16x32xf32>
      %c0_22 = arith.constant 0 : index
      %c0_23 = arith.constant 0 : index
      %30 = vector.load %arg9[%c0_22, %c0_23] : memref<16x32xf32, #tpu.memory_space<vmem>>, vector<16x32xf32>
      tpu.vector_store %arg9[%c0_22, %c0_23], %29 {strides = array<i32>} : memref<16x32xf32, #tpu.memory_space<vmem>>, vector<16x32xf32>,
    } else {
    }
    return
  }
  func.func @transform_0(%arg0: i32, %arg1: i32) -> (i32, i32) {
    %c0_i32 = arith.constant 0 : i32
    %c0_i32_0 = arith.constant 0 : i32
    return %arg0, %c0_i32 : i32, i32
  }
  func.func @transform_1(%arg0: i32, %arg1: i32) -> (i32, i32) {
    %c0_i32 = arith.constant 0 : i32
    %c0_i32_0 = arith.constant 0 : i32
    %c0_i32_1 = arith.constant 0 : i32
    return %c0_i32, %c0_i32_0 : i32, i32
  }
  func.func @transform_2(%arg0: i32, %arg1: i32) -> (i32, i32) {
    %c0_i32 = arith.constant 0 : i32
    %c0_i32_0 = arith.constant 0 : i32
    %c0_i32_1 = arith.constant 0 : i32
    return %c0_i32, %c0_i32_0 : i32, i32
  }
  func.func @transform_3(%arg0: i32, %arg1: i32) -> (i32, i32) {
    %c0_i32 = arith.constant 0 : i32
    %c0_i32_0 = arith.constant 0 : i32
    return %c0_i32, %arg1 : i32, i32
  }
  func.func @transform_4(%arg0: i32, %arg1: i32) -> (i32, i32) {
    %c0_i32 = arith.constant 0 : i32
    %c0_i32_0 = arith.constant 0 : i32
    return %c0_i32, %arg1 : i32, i32
  }
  func.func @transform_5(%arg0: i32, %arg1: i32) -> (i32, i32) {
    %c0_i32 = arith.constant 0 : i32
    %c0_i32_0 = arith.constant 0 : i32
    return %arg1, %c0_i32 : i32, i32
  }
  func.func @transform_6(%arg0: i32, %arg1: i32) -> (i32, i32) {
    %c0_i32 = arith.constant 0 : i32
    %c0_i32_0 = arith.constant 0 : i32
    %c0_i32_1 = arith.constant 0 : i32
    return %c0_i32, %c0_i32_0 : i32, i32
  }
  func.func @transform_7(%arg0: i32, %arg1: i32) -> (i32, i32) {
    %c0_i32 = arith.constant 0 : i32
    %c0_i32_0 = arith.constant 0 : i32
    return %arg0, %c0_i32 : i32, i32
  }
}

</mosaic_0001>

<llo_original>
// kernel: tpu_custom_call.1
$region0: #{tpu_custom_call.1}
  #allocation0 [shape = 'u32[]', space=smem, size = 0x4, offset = 0x4, fixed_abs, tag = 'smem constant byte address 0x4 - core index']
  #allocation1 [shape = 'u32[144,128]{1,0:T(1,128)}', space=vmem, size = 0x12000, scoped, tag = 'internal scratch']
  #allocation2 [shape = 'bf16[16,32]{1,0:T(8,128)(2,1)}', space=vmem, size = 0x1000, scoped, tag = 'scratch operand']
  #allocation3 [shape = 'f32[16,32]{1,0:T(8,128)}', space=vmem, size = 0x2000, scoped, tag = 'scratch operand']
  %s0 = inlined_call_operand.vmem [shape: f32[16,32], index: 0, kind: input, shape index: {}]
  %s1 = inlined_call_operand.vmem [shape: f32[1,32], index: 1, kind: input, shape index: {}]
  %s2 = inlined_call_operand.vmem [shape: f32[1,32], index: 2, kind: input, shape index: {}]
  %s3 = inlined_call_operand.vmem [shape: bf16[32,64], index: 3, kind: input, shape index: {}]
  %s4 = inlined_call_operand.vmem [shape: f32[1,64], index: 4, kind: input, shape index: {}]
  %s5 = inlined_call_operand.vmem [shape: bf16[64,32], index: 5, kind: input, shape index: {}]
  %s6 = inlined_call_operand.vmem [shape: f32[1,32], index: 6, kind: input, shape index: {}]
  %s7 = inlined_call_operand.hbm [shape: f32[16,32], index: 7, kind: output, shape index: {}]
  %s8 = sld [smem:[#allocation0]]
  $region46: #{tpu_custom_call.1} parent=0
    _
  %s10 = ssub.s32 1, %s8
  %s11 = scalar_select 0, %s10, %s8
  $region1: #{tpu_custom_call.1} parent=0
    #allocation4 [shape = 'u8[8192]{0}', space=vmem, size = 0x2000, scoped, tag = 'output window, operand 0, single buffered']
    #allocation5 [shape = 's32[1]{0}', space=sflag, size = 0x4, scoped, tag = 'scoped memory for tpu_custom_call.1']
    %12 = vsyncpa [#allocation5], 0
    // Predicated region
    $region2: #{tpu_custom_call.1} parent=1 // pred_check
      _
    $region3: #{tpu_custom_call.1} parent=1 // pred_check_branch
      %14 = sbr.rel (0) target = $region5
    $region4: #{tpu_custom_call.1} parent=1 // pred_region
      _
    $region5: #{tpu_custom_call.1} parent=1 // pred_fallthru
      _
    // Predicated region
    $region6: #{tpu_custom_call.1} parent=1 // pred_check
      _
    $region7: #{tpu_custom_call.1} parent=1 // pred_check_branch
      %16 = sbr.rel (0) target = $region9
    $region8: #{tpu_custom_call.1} parent=1 // pred_region
      _
    $region9: #{tpu_custom_call.1} parent=1 // pred_fallthru
      _
    // Predicated region
    $region10: #{tpu_custom_call.1} parent=1 // pred_check
      _
    $region11: #{tpu_custom_call.1} parent=1 // pred_check_branch
      %18 = sbr.rel (0) target = $region13
    $region12: #{tpu_custom_call.1} parent=1 // pred_region
      _
    $region13: #{tpu_custom_call.1} parent=1 // pred_fallthru
      _
    // Predicated region
    $region14: #{tpu_custom_call.1} parent=1 // pred_check
      _
    $region15: #{tpu_custom_call.1} parent=1 // pred_check_branch
      %20 = sbr.rel (0) target = $region17
    $region16: #{tpu_custom_call.1} parent=1 // pred_region
      _
    $region17: #{tpu_custom_call.1} parent=1 // pred_fallthru
      _
    // Predicated region
    $region18: #{tpu_custom_call.1} parent=1 // pred_check
      _
    $region19: #{tpu_custom_call.1} parent=1 // pred_check_branch
      %22 = sbr.rel (0) target = $region21
    $region20: #{tpu_custom_call.1} parent=1 // pred_region
      _
    $region21: #{tpu_custom_call.1} parent=1 // pred_fallthru
      _
    // Predicated region
    $region22: #{tpu_custom_call.1} parent=1 // pred_check
      _
    $region23: #{tpu_custom_call.1} parent=1 // pred_check_branch
      %24 = sbr.rel (0) target = $region25
    $region24: #{tpu_custom_call.1} parent=1 // pred_region
      _
    $region25: #{tpu_custom_call.1} parent=1 // pred_fallthru
      _
    // Predicated region
    $region26: #{tpu_custom_call.1} parent=1 // pred_check
      _
    $region27: #{tpu_custom_call.1} parent=1 // pred_check_branch
      %26 = sbr.rel (0) target = $region29
    $region28: #{tpu_custom_call.1} parent=1 // pred_region
      _
    $region29: #{tpu_custom_call.1} parent=1 // pred_fallthru
      _
    %p28 = scmp.eq.s32.totalorder 0, 0
    // Predicated region
    $region30: #{tpu_custom_call.1} parent=1 // pred_check
      %p29 = pneg %p28
    $region31: #{tpu_custom_call.1} parent=1 // pred_check_branch
      %31 = sbr.rel (%p29) target = $region33
    $region32: #{tpu_custom_call.1} parent=1 // pred_region
      %v32 = vld [vmem:[%s0] sm:$0xff]
      %v33 = vld [vmem:[%s0 + $0x8] sm:$0xff]
      %vm34 = vcmask 261120
      %v35 = vsel %vm34, %v32, 0.0
      %36 = vadd.xlane.f32.xlu0 %v35
      %v37 = vpop.xlane.xlu0 %36
      %v38 = vsel %vm34, %v33, 0.0
      %39 = vadd.xlane.f32.xlu0 %v38
      %v40 = vpop.xlane.xlu0 %39
      %v41 = vrcp.pop 32.0
      %v42 = vmul.f32 %v37, %v41
      %v43 = vmul.f32 %v40, %v41
      %v44 = vsub.f32 %v32, %v42
      %v45 = vsub.f32 %v33, %v43
      %v46 = vmul.f32 %v44, %v44
      %v47 = vmul.f32 %v45, %v45
      %v48 = vsel %vm34, %v46, 0.0
      %49 = vadd.xlane.f32.xlu0 %v48
      %v50 = vpop.xlane.xlu0 %49
      %v51 = vsel %vm34, %v47, 0.0
      %52 = vadd.xlane.f32.xlu0 %v51
      %v53 = vpop.xlane.xlu0 %52
      %v54 = vmul.f32 %v50, %v41
      %v55 = vmul.f32 %v53, %v41
      %v56 = vadd.f32 %v54, 1e-05
      %v57 = vadd.f32 %v55, 1e-05
      %v58 = vrsqrt.pop %v56
      %v59 = vrsqrt.pop %v57
      %v60 = vmul.f32 %v44, %v58
      %v61 = vmul.f32 %v45, %v59
      %v62 = vld [vmem:[%s1] sm:$0x1]
      %v64 = vlaneseq
      %v65 = vshrl.u32 %v64, 7
      %v66 = vsub.s32 0, %v65
      %v67 = vrot.slane %v62, %v66
      %v69 = vmul.f32 %v60, %v67
      %v70 = vmul.f32 %v61, %v67
      %v71 = vld [vmem:[%s2] sm:$0x1]
      %v73 = vlaneseq
      %v74 = vshrl.u32 %v73, 7
      %v75 = vsub.s32 0, %v74
      %v76 = vrot.slane %v71, %v75
      %v78 = vadd.f32 %v69, %v76
      %v79 = vadd.f32 %v70, %v76
      %v80 = vpack.c.bf16 %v79, %v78
      %v82 = vunpack.c.l.b16 %v80
      %v83 = vunpack.c.h.b16 %v80
      %v84 = vpack.c.b16 %v82, %v82
      %v85 = vpack.c.b16 %v83, %v83
      %vm88 = vcmask 257024
      %89 = vst.msk [vmem:[#allocation2] sm:$0xf] %vm88, %v84
      %90 = vst.msk [vmem:[#allocation2 + $0x4] sm:$0xf] %vm88, %v85
      %91 = vst.msk [vmem:[#allocation3] sm:$0xff] %vm34, 0.0
      %92 = vst.msk [vmem:[#allocation3 + $0x8] sm:$0xff] %vm34, 0.0
    $region33: #{tpu_custom_call.1} parent=1 // pred_fallthru
      _
    %v93 = vld [vmem:[#allocation2] sm:$0xf]
    %v94 = vld [vmem:[#allocation2 + $0x4] sm:$0xf]
    %v95 = vld [vmem:[%s3] sm:$0xf]
    %v96 = vld [vmem:[%s3 + $0x4] sm:$0xf]
    %v97 = vld [vmem:[%s3 + $0x8] sm:$0xf]
    %v98 = vld [vmem:[%s3 + $0xc] sm:$0xf]
    %v99 = vld [vmem:[%s4] sm:$0x1]
    %v101 = vlaneseq
    %v102 = vshrl.u32 %v101, 7
    %v103 = vsub.s32 0, %v102
    %v104 = vrot.slane %v99, %v103
    %v108 = vunpack.c.l.b16 %v93
    %v109 = vunpack.c.l.b16 %v94
    %v110 = vpack.c.b16 %v109, %v108
    %v115 = vunpack.c.l.b16 %v95
    %v116 = vunpack.c.l.b16 %v96
    %v117 = vunpack.c.l.b16 %v97
    %v118 = vunpack.c.l.b16 %v98
    %v119 = vpack.c.b16 %v116, %v115
    %v120 = vpack.c.b16 %v118, %v117
    %vm123 = vcmask 261120
    %v125 = vsel %vm123, %v110, 0
    %127 = vmatprep.subr.bf16.mxu0 0
    %128 = vmatpush1.bf16.msra.mxu0 0
    %129 = vmatprep.subr.bf16.mxu0 0
    %130 = vmatpush1.bf16.msra.mxu0 0
    %131 = vmatprep.subr.bf16.mxu0 0
    %132 = vmatpush1.bf16.msra.mxu0 0
    %133 = vmatprep.subr.bf16.mxu0 0
    %134 = vmatpush1.bf16.msra.mxu0 0
    %135 = vmatprep.subr.bf16.mxu0 0
    %136 = vmatpush1.bf16.msra.mxu0 0
    %137 = vmatprep.subr.bf16.mxu0 0
    %138 = vmatpush1.bf16.msra.mxu0 0
    %139 = vmatprep.subr.bf16.mxu0 0
    %140 = vmatpush1.bf16.msra.mxu0 %v120
    %141 = vmatprep.subr.bf16.mxu0 0
    %142 = vmatpush1.bf16.msra.mxu0 %v119
    %143 = vmatprep.subr.bf16.mxu0 0
    %144 = vmatpush2.bf16.msra.mxu0 0
    %145 = vmatprep.subr.bf16.mxu0 0
    %146 = vmatpush2.bf16.msra.mxu0 0
    %147 = vmatprep.subr.bf16.mxu0 0
    %148 = vmatpush2.bf16.msra.mxu0 0
    %149 = vmatprep.subr.bf16.mxu0 0
    %150 = vmatpush2.bf16.msra.mxu0 0
    %151 = vmatprep.subr.bf16.mxu0 0
    %152 = vmatpush2.bf16.msra.mxu0 0
    %153 = vmatprep.subr.bf16.mxu0 0
    %154 = vmatpush2.bf16.msra.mxu0 0
    %155 = vmatprep.subr.bf16.mxu0 0
    %156 = vmatpush2.bf16.msra.mxu0 0
    %157 = vmatprep.subr.bf16.mxu0 0
    %158 = vmatpush2.bf16.msra.mxu0 0
    %159 = vmatprep.mubr.bf16.mxu0 0
    %160 = vmatmul.mubr.bf16.gmra.mxu0 %v125
    %v161 = vpop.f32.mrf.mxu0
    %v162 = vadd.f32 %v104, %v161
    %v163 = vpop.f32.mrf.mxu0
    %v164 = vpop.f32.mrf.mxu0
    %v165 = vadd.f32 %v104, %v164
    %v166 = vpop.f32.mrf.mxu0
    %167 = vdwg.mxu0
    %v168 = vmul.f32 %v162, 0.5
    %v169 = vmul.f32 %v165, 0.5
    %v170 = vmul.f32 %v162, 0.70710677
    %v171 = vmul.f32 %v165, 0.70710677
    %v172 = verf.f32.pop %v170
    %v173 = verf.f32.pop %v171
    %v174 = vadd.f32 %v172, 1.0
    %v175 = vadd.f32 %v173, 1.0
    %v176 = vmul.f32 %v168, %v174
    %v177 = vmul.f32 %v169, %v175
    %v178 = vld [vmem:[#allocation3] sm:$0xff]
    %v179 = vld [vmem:[#allocation3 + $0x8] sm:$0xff]
    %v180 = vpack.c.bf16 %v177, %v176
    %v181 = vld [vmem:[%s5] sm:$0xf]
    %v182 = vld [vmem:[%s5 + $0x4] sm:$0xf]
    %v183 = vld [vmem:[%s5 + $0x8] sm:$0xf]
    %v184 = vld [vmem:[%s5 + $0xc] sm:$0xf]
    %v185 = vld [vmem:[%s5 + $0x10] sm:$0xf]
    %v186 = vld [vmem:[%s5 + $0x14] sm:$0xf]
    %v187 = vld [vmem:[%s5 + $0x18] sm:$0xf]
    %v188 = vld [vmem:[%s5 + $0x1c] sm:$0xf]
    %v197 = vunpack.c.l.b16 %v181
    %v198 = vunpack.c.l.b16 %v182
    %v199 = vunpack.c.l.b16 %v183
    %v200 = vunpack.c.l.b16 %v184
    %v201 = vunpack.c.l.b16 %v185
    %v202 = vunpack.c.l.b16 %v186
    %v203 = vunpack.c.l.b16 %v187
    %v204 = vunpack.c.l.b16 %v188
    %v205 = vpack.c.b16 %v198, %v197
    %v206 = vpack.c.b16 %v200, %v199
    %v207 = vpack.c.b16 %v202, %v201
    %v208 = vpack.c.b16 %v204, %v203
    %vm213 = vcmask 523264
    %v215 = vsel %vm213, %v180, 0
    %217 = vmatprep.subr.bf16.mxu0 0
    %218 = vmatpush1.bf16.msra.mxu0 0
    %219 = vmatprep.subr.bf16.mxu0 0
    %220 = vmatpush1.bf16.msra.mxu0 0
    %221 = vmatprep.subr.bf16.mxu0 0
    %222 = vmatpush1.bf16.msra.mxu0 0
    %223 = vmatprep.subr.bf16.mxu0 0
    %224 = vmatpush1.bf16.msra.mxu0 0
    %225 = vmatprep.subr.bf16.mxu0 0
    %226 = vmatpush1.bf16.msra.mxu0 %v208
    %227 = vmatprep.subr.bf16.mxu0 0
    %228 = vmatpush1.bf16.msra.mxu0 %v207
    %229 = vmatprep.subr.bf16.mxu0 0
    %230 = vmatpush1.bf16.msra.mxu0 %v206
    %231 = vmatprep.subr.bf16.mxu0 0
    %232 = vmatpush1.bf16.msra.mxu0 %v205
    %233 = vmatprep.subr.bf16.mxu0 0
    %234 = vmatpush2.bf16.msra.mxu0 0
    %235 = vmatprep.subr.bf16.mxu0 0
    %236 = vmatpush2.bf16.msra.mxu0 0
    %237 = vmatprep.subr.bf16.mxu0 0
    %238 = vmatpush2.bf16.msra.mxu0 0
    %239 = vmatprep.subr.bf16.mxu0 0
    %240 = vmatpush2.bf16.msra.mxu0 0
    %241 = vmatprep.subr.bf16.mxu0 0
    %242 = vmatpush2.bf16.msra.mxu0 0
    %243 = vmatprep.subr.bf16.mxu0 0
    %244 = vmatpush2.bf16.msra.mxu0 0
    %245 = vmatprep.subr.bf16.mxu0 0
    %246 = vmatpush2.bf16.msra.mxu0 0
    %247 = vmatprep.subr.bf16.mxu0 0
    %248 = vmatpush2.bf16.msra.mxu0 0
    %249 = vmatprep.mubr.bf16.mxu0 0
    %250 = vmatmul.mubr.bf16.gmra.mxu0 %v215
    %v251 = vpop.f32.mrf.mxu0
    %v252 = vadd.f32 0.0, %v251
    %v253 = vpop.f32.mrf.mxu0
    %v254 = vpop.f32.mrf.mxu0
    %v255 = vadd.f32 0.0, %v254
    %v256 = vpop.f32.mrf.mxu0
    %257 = vdwg.mxu0
    %v258 = vadd.f32 %v178, %v252
    %v259 = vadd.f32 %v179, %v255
    %260 = vst.msk [vmem:[#allocation3] sm:$0xff] %vm123, %v258
    %261 = vst.msk [vmem:[#allocation3 + $0x8] sm:$0xff] %vm123, %v259
    // Predicated region
    $region34: #{tpu_custom_call.1} parent=1 // pred_check
      %p262 = pneg %p28
    $region35: #{tpu_custom_call.1} parent=1 // pred_check_branch
      %264 = sbr.rel (%p262) target = $region37
    $region36: #{tpu_custom_call.1} parent=1 // pred_region
      %v265 = vld [vmem:[#allocation3] sm:$0xff]
      %v266 = vld [vmem:[#allocation3 + $0x8] sm:$0xff]
      %v267 = vld [vmem:[%s6] sm:$0x1]
      %v269 = vlaneseq
      %v270 = vshrl.u32 %v269, 7
      %v271 = vsub.s32 0, %v270
      %v272 = vrot.slane %v267, %v271
      %v274 = vadd.f32 %v265, %v272
      %v275 = vadd.f32 %v266, %v272
      %276 = vst.msk [vmem:[#allocation4] sm:$0xff] %vm123, %v274
      %277 = vst.msk [vmem:[#allocation4 + $0x8] sm:$0xff] %vm123, %v275
    $region37: #{tpu_custom_call.1} parent=1 // pred_fallthru
      _
    // Predicated region
    $region38: #{tpu_custom_call.1} parent=1 // pred_check
      _
    $region39: #{tpu_custom_call.1} parent=1 // pred_check_branch
      %279 = sbr.rel (0) target = $region41
    $region40: #{tpu_custom_call.1} parent=1 // pred_region
      %s281 = ssub.s32 256, 256
      %282 = vsyncadd [#allocation5], %s281
      %s283 = sshll.u32 [#allocation4], 4
      %s284 = int_to_ptr.vmem [resolvable:$true] %s283
      %289 = dma.vmem_to_hbm [thread:$0]  %s284, 256, %s7, [#allocation5], 128, 128, 8
    $region41: #{tpu_custom_call.1} parent=1 // pred_fallthru
      _
    // Predicated region
    $region42: #{tpu_custom_call.1} parent=1 // pred_check
      _
    $region43: #{tpu_custom_call.1} parent=1 // pred_check_branch
      %291 = sbr.rel (0) target = $region45
    $region44: #{tpu_custom_call.1} parent=1 // pred_region
      %292 = dma.done [#allocation5], 256
    $region45: #{tpu_custom_call.1} parent=1 // pred_fallthru
      _
    %293 = vsyncpa [#allocation5], 1

// kernel: tpu_custom_call.1
$region0: #{tpu_custom_call.1}
  #allocation0 [shape = 'u32[]', space=smem, size = 0x4, offset = 0x4, fixed_abs, tag = 'smem constant byte address 0x4 - core index']
  #allocation1 [shape = 'u32[144,128]{1,0:T(1,128)}', space=vmem, size = 0x12000, scoped, tag = 'internal scratch']
  #allocation2 [shape = 'bf16[16,32]{1,0:T(8,128)(2,1)}', space=vmem, size = 0x1000, scoped, tag = 'scratch operand']
  #allocation3 [shape = 'f32[16,32]{1,0:T(8,128)}', space=vmem, size = 0x2000, scoped, tag = 'scratch operand']
  %s0 = inlined_call_operand.vmem [shape: f32[16,32], index: 0, kind: input, shape index: {}]
  %s1 = inlined_call_operand.vmem [shape: f32[1,32], index: 1, kind: input, shape index: {}]
  %s2 = inlined_call_operand.vmem [shape: f32[1,32], index: 2, kind: input, shape index: {}]
  %s3 = inlined_call_operand.vmem [shape: bf16[32,64], index: 3, kind: input, shape index: {}]
  %s4 = inlined_call_operand.vmem [shape: f32[1,64], index: 4, kind: input, shape index: {}]
  %s5 = inlined_call_operand.vmem [shape: bf16[64,32], index: 5, kind: input, shape index: {}]
  %s6 = inlined_call_operand.vmem [shape: f32[1,32], index: 6, kind: input, shape index: {}]
  %s7 = inlined_call_operand.hbm [shape: f32[16,32], index: 7, kind: output, shape index: {}]
  %s8 = sld [smem:[#allocation0]]
  $region46: #{tpu_custom_call.1} parent=0
    _
  %s10 = ssub.s32 1, %s8
  %s11 = scalar_select 0, %s10, %s8
  $region1: #{tpu_custom_call.1} parent=0
    #allocation4 [shape = 'u8[8192]{0}', space=vmem, size = 0x2000, scoped, tag = 'output window, operand 0, single buffered']
    #allocation5 [shape = 's32[1]{0}', space=sflag, size = 0x4, scoped, tag = 'scoped memory for tpu_custom_call.1']
    %12 = vsyncpa [#allocation5], 0
    // Predicated region
    $region2: #{tpu_custom_call.1} parent=1 // pred_check
      _
    $region3: #{tpu_custom_call.1} parent=1 // pred_check_branch
      %14 = sbr.rel (0) target = $region5
    $region4: #{tpu_custom_call.1} parent=1 // pred_region
      _
    $region5: #{tpu_custom_call.1} parent=1 // pred_fallthru
      _
    // Predicated region
    $region6: #{tpu_custom_call.1} parent=1 // pred_check
      _
    $region7: #{tpu_custom_call.1} parent=1 // pred_check_branch
      %16 = sbr.rel (0) target = $region9
    $region8: #{tpu_custom_call.1} parent=1 // pred_region
      _
    $region9: #{tpu_custom_call.1} parent=1 // pred_fallthru
      _
    // Predicated region
    $region10: #{tpu_custom_call.1} parent=1 // pred_check
      _
    $region11: #{tpu_custom_call.1} parent=1 // pred_check_branch
      %18 = sbr.rel (0) target = $region13
    $region12: #{tpu_custom_call.1} parent=1 // pred_region
      _
    $region13: #{tpu_custom_call.1} parent=1 // pred_fallthru
      _
    // Predicated region
    $region14: #{tpu_custom_call.1} parent=1 // pred_check
      _
    $region15: #{tpu_custom_call.1} parent=1 // pred_check_branch
      %20 = sbr.rel (0) target = $region17
    $region16: #{tpu_custom_call.1} parent=1 // pred_region
      _
    $region17: #{tpu_custom_call.1} parent=1 // pred_fallthru
      _
    // Predicated region
    $region18: #{tpu_custom_call.1} parent=1 // pred_check
      _
    $region19: #{tpu_custom_call.1} parent=1 // pred_check_branch
      %22 = sbr.rel (0) target = $region21
    $region20: #{tpu_custom_call.1} parent=1 // pred_region
      _
    $region21: #{tpu_custom_call.1} parent=1 // pred_fallthru
      _
    // Predicated region
    $region22: #{tpu_custom_call.1} parent=1 // pred_check
      _
    $region23: #{tpu_custom_call.1} parent=1 // pred_check_branch
      %24 = sbr.rel (0) target = $region25
    $region24: #{tpu_custom_call.1} parent=1 // pred_region
      _
    $region25: #{tpu_custom_call.1} parent=1 // pred_fallthru
      _
    // Predicated region
    $region26: #{tpu_custom_call.1} parent=1 // pred_check
      _
    $region27: #{tpu_custom_call.1} parent=1 // pred_check_branch
      %26 = sbr.rel (0) target = $region29
    $region28: #{tpu_custom_call.1} parent=1 // pred_region
      _
    $region29: #{tpu_custom_call.1} parent=1 // pred_fallthru
      _
    %p28 = scmp.eq.s32.totalorder 0, 0
    // Predicated region
    $region30: #{tpu_custom_call.1} parent=1 // pred_check
      %p29 = pneg %p28
    $region31: #{tpu_custom_call.1} parent=1 // pred_check_branch
      %31 = sbr.rel (%p29) target = $region33
    $region32: #{tpu_custom_call.1} parent=1 // pred_region
      %v32 = vld [vmem:[%s0] sm:$0xff]
      %v33 = vld [vmem:[%s0 + $0x8] sm:$0xff]
      %vm34 = vcmask 261120
      %v35 = vsel %vm34, %v32, 0.0
      %36 = vadd.xlane.f32.xlu0 %v35
      %v37 = vpop.xlane.xlu0 %36
      %v38 = vsel %vm34, %v33, 0.0
      %39 = vadd.xlane.f32.xlu0 %v38
      %v40 = vpop.xlane.xlu0 %39
      %v41 = vrcp.pop 32.0
      %v42 = vmul.f32 %v37, %v41
      %v43 = vmul.f32 %v40, %v41
      %v44 = vsub.f32 %v32, %v42
      %v45 = vsub.f32 %v33, %v43
      %v46 = vmul.f32 %v44, %v44
      %v47 = vmul.f32 %v45, %v45
      %v48 = vsel %vm34, %v46, 0.0
      %49 = vadd.xlane.f32.xlu0 %v48
      %v50 = vpop.xlane.xlu0 %49
      %v51 = vsel %vm34, %v47, 0.0
      %52 = vadd.xlane.f32.xlu0 %v51
      %v53 = vpop.xlane.xlu0 %52
      %v54 = vmul.f32 %v50, %v41
      %v55 = vmul.f32 %v53, %v41
      %v56 = vadd.f32 %v54, 1e-05
      %v57 = vadd.f32 %v55, 1e-05
      %v58 = vrsqrt.pop %v56
      %v59 = vrsqrt.pop %v57
      %v60 = vmul.f32 %v44, %v58
      %v61 = vmul.f32 %v45, %v59
      %v62 = vld [vmem:[%s1] sm:$0x1]
      %v64 = vlaneseq
      %v65 = vshrl.u32 %v64, 7
      %v66 = vsub.s32 0, %v65
      %v67 = vrot.slane %v62, %v66
      %v69 = vmul.f32 %v60, %v67
      %v70 = vmul.f32 %v61, %v67
      %v71 = vld [vmem:[%s2] sm:$0x1]
      %v73 = vlaneseq
      %v74 = vshrl.u32 %v73, 7
      %v75 = vsub.s32 0, %v74
      %v76 = vrot.slane %v71, %v75
      %v78 = vadd.f32 %v69, %v76
      %v79 = vadd.f32 %v70, %v76
      %v80 = vpack.c.bf16 %v79, %v78
      %v82 = vunpack.c.l.b16 %v80
      %v83 = vunpack.c.h.b16 %v80
      %v84 = vpack.c.b16 %v82, %v82
      %v85 = vpack.c.b16 %v83, %v83
      %vm88 = vcmask 257024
      %89 = vst.msk [vmem:[#allocation2] sm:$0xf] %vm88, %v84
      %90 = vst.msk [vmem:[#allocation2 + $0x4] sm:$0xf] %vm88, %v85
      %91 = vst.msk [vmem:[#allocation3] sm:$0xff] %vm34, 0.0
      %92 = vst.msk [vmem:[#allocation3 + $0x8] sm:$0xff] %vm34, 0.0
    $region33: #{tpu_custom_call.1} parent=1 // pred_fallthru
      _
    %v93 = vld [vmem:[#allocation2] sm:$0xf]
    %v94 = vld [vmem:[#allocation2 + $0x4] sm:$0xf]
    %v95 = vld [vmem:[%s3] sm:$0xf]
    %v96 = vld [vmem:[%s3 + $0x4] sm:$0xf]
    %v97 = vld [vmem:[%s3 + $0x8] sm:$0xf]
    %v98 = vld [vmem:[%s3 + $0xc] sm:$0xf]
    %v99 = vld [vmem:[%s4] sm:$0x1]
    %v101 = vlaneseq
    %v102 = vshrl.u32 %v101, 7
    %v103 = vsub.s32 0, %v102
    %v104 = vrot.slane %v99, %v103
    %v108 = vunpack.c.l.b16 %v93
    %v109 = vunpack.c.l.b16 %v94
    %v110 = vpack.c.b16 %v109, %v108
    %v115 = vunpack.c.l.b16 %v95
    %v116 = vunpack.c.l.b16 %v96
    %v117 = vunpack.c.l.b16 %v97
    %v118 = vunpack.c.l.b16 %v98
    %v119 = vpack.c.b16 %v116, %v115
    %v120 = vpack.c.b16 %v118, %v117
    %vm123 = vcmask 261120
    %v125 = vsel %vm123, %v110, 0
    %127 = vmatprep.subr.bf16.mxu0 0
    %128 = vmatpush1.bf16.msra.mxu0 0
    %129 = vmatprep.subr.bf16.mxu0 0
    %130 = vmatpush1.bf16.msra.mxu0 0
    %131 = vmatprep.subr.bf16.mxu0 0
    %132 = vmatpush1.bf16.msra.mxu0 0
    %133 = vmatprep.subr.bf16.mxu0 0
    %134 = vmatpush1.bf16.msra.mxu0 0
    %135 = vmatprep.subr.bf16.mxu0 0
    %136 = vmatpush1.bf16.msra.mxu0 0
    %137 = vmatprep.subr.bf16.mxu0 0
    %138 = vmatpush1.bf16.msra.mxu0 0
    %139 = vmatprep.subr.bf16.mxu0 0
    %140 = vmatpush1.bf16.msra.mxu0 %v120
    %141 = vmatprep.subr.bf16.mxu0 0
    %142 = vmatpush1.bf16.msra.mxu0 %v119
    %143 = vmatprep.subr.bf16.mxu0 0
    %144 = vmatpush2.bf16.msra.mxu0 0
    %145 = vmatprep.subr.bf16.mxu0 0
    %146 = vmatpush2.bf16.msra.mxu0 0
    %147 = vmatprep.subr.bf16.mxu0 0
    %148 = vmatpush2.bf16.msra.mxu0 0
    %149 = vmatprep.subr.bf16.mxu0 0
    %150 = vmatpush2.bf16.msra.mxu0 0
    %151 = vmatprep.subr.bf16.mxu0 0
    %152 = vmatpush2.bf16.msra.mxu0 0
    %153 = vmatprep.subr.bf16.mxu0 0
    %154 = vmatpush2.bf16.msra.mxu0 0
    %155 = vmatprep.subr.bf16.mxu0 0
    %156 = vmatpush2.bf16.msra.mxu0 0
    %157 = vmatprep.subr.bf16.mxu0 0
    %158 = vmatpush2.bf16.msra.mxu0 0
    %159 = vmatprep.mubr.bf16.mxu0 0
    %160 = vmatmul.mubr.bf16.gmra.mxu0 %v125
    %v161 = vpop.f32.mrf.mxu0
    %v162 = vadd.f32 %v104, %v161
    %v163 = vpop.f32.mrf.mxu0
    %v164 = vpop.f32.mrf.mxu0
    %v165 = vadd.f32 %v104, %v164
    %v166 = vpop.f32.mrf.mxu0
    %167 = vdwg.mxu0
    %v168 = vmul.f32 %v162, 0.5
    %v169 = vmul.f32 %v165, 0.5
    %v170 = vmul.f32 %v162, 0.70710677
    %v171 = vmul.f32 %v165, 0.70710677
    %v172 = verf.f32.pop %v170
    %v173 = verf.f32.pop %v171
    %v174 = vadd.f32 %v172, 1.0
    %v175 = vadd.f32 %v173, 1.0
    %v176 = vmul.f32 %v168, %v174
    %v177 = vmul.f32 %v169, %v175
    %v178 = vld [vmem:[#allocation3] sm:$0xff]
    %v179 = vld [vmem:[#allocation3 + $0x8] sm:$0xff]
    %v180 = vpack.c.bf16 %v177, %v176
    %v181 = vld [vmem:[%s5] sm:$0xf]
    %v182 = vld [vmem:[%s5 + $0x4] sm:$0xf]
    %v183 = vld [vmem:[%s5 + $0x8] sm:$0xf]
    %v184 = vld [vmem:[%s5 + $0xc] sm:$0xf]
    %v185 = vld [vmem:[%s5 + $0x10] sm:$0xf]
    %v186 = vld [vmem:[%s5 + $0x14] sm:$0xf]
    %v187 = vld [vmem:[%s5 + $0x18] sm:$0xf]
    %v188 = vld [vmem:[%s5 + $0x1c] sm:$0xf]
    %v197 = vunpack.c.l.b16 %v181
    %v198 = vunpack.c.l.b16 %v182
    %v199 = vunpack.c.l.b16 %v183
    %v200 = vunpack.c.l.b16 %v184
    %v201 = vunpack.c.l.b16 %v185
    %v202 = vunpack.c.l.b16 %v186
    %v203 = vunpack.c.l.b16 %v187
    %v204 = vunpack.c.l.b16 %v188
    %v205 = vpack.c.b16 %v198, %v197
    %v206 = vpack.c.b16 %v200, %v199
    %v207 = vpack.c.b16 %v202, %v201
    %v208 = vpack.c.b16 %v204, %v203
    %vm213 = vcmask 523264
    %v215 = vsel %vm213, %v180, 0
    %217 = vmatprep.subr.bf16.mxu0 0
    %218 = vmatpush1.bf16.msra.mxu0 0
    %219 = vmatprep.subr.bf16.mxu0 0
    %220 = vmatpush1.bf16.msra.mxu0 0
    %221 = vmatprep.subr.bf16.mxu0 0
    %222 = vmatpush1.bf16.msra.mxu0 0
    %223 = vmatprep.subr.bf16.mxu0 0
    %224 = vmatpush1.bf16.msra.mxu0 0
    %225 = vmatprep.subr.bf16.mxu0 0
    %226 = vmatpush1.bf16.msra.mxu0 %v208
    %227 = vmatprep.subr.bf16.mxu0 0
    %228 = vmatpush1.bf16.msra.mxu0 %v207
    %229 = vmatprep.subr.bf16.mxu0 0
    %230 = vmatpush1.bf16.msra.mxu0 %v206
    %231 = vmatprep.subr.bf16.mxu0 0
    %232 = vmatpush1.bf16.msra.mxu0 %v205
    %233 = vmatprep.subr.bf16.mxu0 0
    %234 = vmatpush2.bf16.msra.mxu0 0
    %235 = vmatprep.subr.bf16.mxu0 0
    %236 = vmatpush2.bf16.msra.mxu0 0
    %237 = vmatprep.subr.bf16.mxu0 0
    %238 = vmatpush2.bf16.msra.mxu0 0
    %239 = vmatprep.subr.bf16.mxu0 0
    %240 = vmatpush2.bf16.msra.mxu0 0
    %241 = vmatprep.subr.bf16.mxu0 0
    %242 = vmatpush2.bf16.msra.mxu0 0
    %243 = vmatprep.subr.bf16.mxu0 0
    %244 = vmatpush2.bf16.msra.mxu0 0
    %245 = vmatprep.subr.bf16.mxu0 0
    %246 = vmatpush2.bf16.msra.mxu0 0
    %247 = vmatprep.subr.bf16.mxu0 0
    %248 = vmatpush2.bf16.msra.mxu0 0
    %249 = vmatprep.mubr.bf16.mxu0 0
    %250 = vmatmul.mubr.bf16.gmra.mxu0 %v215
    %v251 = vpop.f32.mrf.mxu0
    %v252 = vadd.f32 0.0, %v251
    %v253 = vpop.f32.mrf.mxu0
    %v254 = vpop.f32.mrf.mxu0
    %v255 = vadd.f32 0.0, %v254
    %v256 = vpop.f32.mrf.mxu0
    %257 = vdwg.mxu0
    %v258 = vadd.f32 %v178, %v252
    %v259 = vadd.f32 %v179, %v255
    %260 = vst.msk [vmem:[#allocation3] sm:$0xff] %vm123, %v258
    %261 = vst.msk [vmem:[#allocation3 + $0x8] sm:$0xff] %vm123, %v259
    // Predicated region
    $region34: #{tpu_custom_call.1} parent=1 // pred_check
      %p262 = pneg %p28
    $region35: #{tpu_custom_call.1} parent=1 // pred_check_branch
      %264 = sbr.rel (%p262) target = $region37
    $region36: #{tpu_custom_call.1} parent=1 // pred_region
      %v265 = vld [vmem:[#allocation3] sm:$0xff]
      %v266 = vld [vmem:[#allocation3 + $0x8] sm:$0xff]
      %v267 = vld [vmem:[%s6] sm:$0x1]
      %v269 = vlaneseq
      %v270 = vshrl.u32 %v269, 7
      %v271 = vsub.s32 0, %v270
      %v272 = vrot.slane %v267, %v271
      %v274 = vadd.f32 %v265, %v272
      %v275 = vadd.f32 %v266, %v272
      %276 = vst.msk [vmem:[#allocation4] sm:$0xff] %vm123, %v274
      %277 = vst.msk [vmem:[#allocation4 + $0x8] sm:$0xff] %vm123, %v275
    $region37: #{tpu_custom_call.1} parent=1 // pred_fallthru
      _
    // Predicated region
    $region38: #{tpu_custom_call.1} parent=1 // pred_check
      _
    $region39: #{tpu_custom_call.1} parent=1 // pred_check_branch
      %279 = sbr.rel (0) target = $region41
    $region40: #{tpu_custom_call.1} parent=1 // pred_region
      %s281 = ssub.s32 256, 256
      %282 = vsyncadd [#allocation5], %s281
      %s283 = sshll.u32 [#allocation4], 4
      %s284 = int_to_ptr.vmem [resolvable:$true] %s283
      %289 = dma.vmem_to_hbm [thread:$0]  %s284, 256, %s7, [#allocation5], 128, 128, 8
    $region41: #{tpu_custom_call.1} parent=1 // pred_fallthru
      _
    // Predicated region
    $region42: #{tpu_custom_call.1} parent=1 // pred_check
      _
    $region43: #{tpu_custom_call.1} parent=1 // pred_check_branch
      %291 = sbr.rel (0) target = $region45
    $region44: #{tpu_custom_call.1} parent=1 // pred_region
      %292 = dma.done [#allocation5], 256
    $region45: #{tpu_custom_call.1} parent=1 // pred_fallthru
      _
    %293 = vsyncpa [#allocation5], 1

</llo_original>
